<compile_context>
chip_gen: v6e
topology: v6e:2x2x1
jax: 0.10.0
libtpu: 0.0.40
codegen_flags: <defaults>
</compile_context>

<pallas_src>
import functools

import jax
import jax.numpy as jnp
from jax.experimental import pallas as pl
from jax.experimental.pallas import tpu as pltpu


def _round_up(x: int, k: int) -> int:
    return (x + k - 1) // k * k


def _cdiv(a: int, b: int) -> int:
    return -(-a // b)


def _largest_divisor_leq(n: int, cap: int) -> int:
    cap = max(1, min(n, cap))
    for d in range(cap, 0, -1):
        if n % d == 0:
            return d
    return 1


def _hw_budget():
    """Returns (vmem_limit_bytes, per-buffer tile target bytes) per TPU generation."""
    try:
        cap = int(pltpu.get_tpu_info().vmem_capacity_bytes)
    except Exception:  # unknown backend / old jax: assume the smaller (v7x) VMEM
        cap = 64 * 1024 * 1024
    if cap >= 128 * 1024 * 1024:                       # v5e / v6e
        return 64 * 1024 * 1024, 4 * 1024 * 1024
    return 40 * 1024 * 1024, 2 * 1024 * 1024           # v7x (64 MiB per TC)


# ----------------------------------------------------------------------------
# Kernels
# ----------------------------------------------------------------------------
def _resident_kernel(x_ref, g_ref, be_ref, o_ref, *, eps, inv_count):
    """Whole tensor resident in VMEM: stats + apply in one pass."""
    x = jnp.maximum(x_ref[...].astype(jnp.float32), 0.0)           # (n, c, m)
    s = jnp.sum(jnp.sum(x, axis=2, keepdims=True), axis=0)         # (c, 1)
    sq = jnp.sum(jnp.sum(x * x, axis=2, keepdims=True), axis=0)    # (c, 1)
    mean = s * inv_count
    var = jnp.maximum(sq * inv_count - mean * mean, 0.0)
    a = g_ref[...] * jax.lax.rsqrt(var + eps)                      # (c, 1)
    b = be_ref[...] - mean * a
    o_ref[...] = (x * a[None] + b[None]).astype(o_ref.dtype)


def _stats_kernel(x_ref, sum_ref, sq_ref, *, m, mb, total):
    """Pass 1: per-channel lane-partial sum / sumsq of relu(x), 2-way split."""
    i = pl.program_id(0)          # megacore half ("parallel")
    k = pl.program_id(1)          # flat tile index within the half ("arbitrary")

    @pl.when(k == 0)
    def _():
        sum_ref[...] = jnp.zeros_like(sum_ref)
        sq_ref[...] = jnp.zeros_like(sq_ref)

    t = i * pl.num_programs(1) + k          # flat (n_block, m_block) tile index

    @pl.when(t < total)
    def _():
        bn, c, bm = x_ref.shape
        lw = sum_ref.shape[-1]
        m_idx = t % mb
        lane = jax.lax.broadcasted_iota(jnp.int32, (1, 1, bm), 2)
        mask = (m_idx * bm + lane) < m                   # partial-tile lane mask
        x = jnp.where(mask, jnp.maximum(x_ref[...].astype(jnp.float32), 0.0), 0.0)
        s = jnp.sum(x, axis=0)                           # (c, bm)  VPU
        sq = jnp.sum(x * x, axis=0)                      # (c, bm)  VPU
        if lw == 128:
            # Deferred lane reduce: keep 128 lane-partials (pure VPU adds,
            # pairwise-sum accuracy); final 128->1 reduce happens in the wrapper.
            groups = bm // 128
            ps = s[:, 0:128]
            psq = sq[:, 0:128]
            for g in range(1, groups):
                ps = ps + s[:, g * 128:(g + 1) * 128]
                psq = psq + sq[:, g * 128:(g + 1) * 128]
        else:  # tiny m (< 128): full-extent lane tile, direct reduce
            ps = jnp.sum(s, axis=1, keepdims=True)
            psq = jnp.sum(sq, axis=1, keepdims=True)
        sum_ref[...] += ps[None]
        sq_ref[...] += psq[None]


def _apply_kernel(x_ref, a_ref, b_ref, o_ref):
    """Pass 2: y = relu(x) * a + b, lane-dense streaming."""
    c = a_ref.shape[0]
    a = a_ref[...].reshape(1, c, 1)
    b = b_ref[...].reshape(1, c, 1)
    x = jnp.maximum(x_ref[...].astype(jnp.float32), 0.0)
    o_ref[...] = (x * a + b).astype(o_ref.dtype)


# ----------------------------------------------------------------------------
# Wrapper
# ----------------------------------------------------------------------------
def relu_bn2d(x_nchw: jax.Array, gamma: jax.Array, beta: jax.Array,
              eps: float = 1e-5, *, force_tiled: bool = False) -> jax.Array:
    """x_nchw: (N, C, H, W) float; gamma/beta: (C,). Returns (N, C, H, W) in x's dtype."""
    n, c, h, w = x_nchw.shape
    m = h * w
    out_dtype = x_nchw.dtype
    x3d = x_nchw.reshape(n, c, m)                        # free view, native dtype
    g = gamma.reshape(c, 1).astype(jnp.float32)
    be = beta.reshape(c, 1).astype(jnp.float32)
    inv_count = 1.0 / float(n * m)
    eps = float(eps)

    vmem_limit, tile_target = _hw_budget()
    c_pad = _round_up(c, 8)                              # sublane-padded channel count
    m_pad = _round_up(m, 128)

    # --- VMEM-resident single-pass fast path (small / medium activations) ---
    resident_f32_bytes = n * c_pad * m_pad * 4
    if (not force_tiled) and 4 * resident_f32_bytes <= vmem_limit:
        out3d = pl.pallas_call(
            functools.partial(_resident_kernel, eps=eps, inv_count=inv_count),
            out_shape=jax.ShapeDtypeStruct((n, c, m), out_dtype),
            compiler_params=pltpu.CompilerParams(vmem_limit_bytes=vmem_limit),
        )(x3d, g, be)
        return out3d.reshape(n, c, h, w)

    # --- Tiled two-pass path ---
    # Lane tile: multiple of 128 within the padded-C byte budget (cap lane groups
    # at 64 to bound the unrolled partial-sum loop).
    if m >= 128:
        bm_cap = max(128, (tile_target // (c_pad * 4)) // 128 * 128)
        bm_cap = min(bm_cap, 64 * 128)
        bm = min(m_pad, bm_cap)
        if bm >= m:
            bm = m                      # full extent (may not be a 128 multiple)
    else:
        bm = m
    bn_cap = max(1, tile_target // (c_pad * bm * 4))
    bn = _largest_divisor_leq(n, bn_cap)
    nb = n // bn
    mb = _cdiv(m, bm)
    total = nb * mb
    half = _cdiv(total, 2)
    lw = 128 if bm % 128 == 0 else 1

    # Pass 1: per-core-half partial statistics.
    def x1_map(i, k):
        t = jnp.minimum(i * half + k, total - 1)
        return (t // mb, 0, t % mb)

    acc_spec = pl.BlockSpec((1, c, lw), lambda i, k: (i, 0, 0))
    p_sum, p_sq = pl.pallas_call(
        functools.partial(_stats_kernel, m=m, mb=mb, total=total),
        out_shape=(jax.ShapeDtypeStruct((2, c, lw), jnp.float32),
                   jax.ShapeDtypeStruct((2, c, lw), jnp.float32)),
        grid=(2, half),
        in_specs=[pl.BlockSpec((bn, c, bm), x1_map)],
        out_specs=(acc_spec, acc_spec),
        compiler_params=pltpu.CompilerParams(
            dimension_semantics=("parallel", "arbitrary"),
            vmem_limit_bytes=vmem_limit),
    )(x3d)

    # Fold partials + gamma/beta into per-channel scale/bias (tiny XLA ops).
    s = jnp.sum(p_sum, axis=(0, 2))
    sq = jnp.sum(p_sq, axis=(0, 2))
    mean = s * inv_count
    var = jnp.maximum(sq * inv_count - mean * mean, 0.0)
    a = g[:, 0] * jax.lax.rsqrt(var + eps)
    b = be[:, 0] - mean * a
    a2 = a.reshape(c, 1)
    b2 = b.reshape(c, 1)

    # Pass 2: streaming apply, both axes parallel (megacore split on v7x).
    x_spec = pl.BlockSpec((bn, c, bm), lambda i, j: (i, 0, j))
    cvec = pl.BlockSpec((c, 1), lambda i, j: (0, 0))
    out3d = pl.pallas_call(
        _apply_kernel,
        out_shape=jax.ShapeDtypeStruct((n, c, m), out_dtype),
        grid=(nb, mb),
        in_specs=[x_spec, cvec, cvec],
        out_specs=x_spec,
        compiler_params=pltpu.CompilerParams(
            dimension_semantics=("parallel", "parallel"),
            vmem_limit_bytes=vmem_limit),
    )(x3d, a2, b2)
    return out3d.reshape(n, c, h, w)


def _reference(x, gamma, beta, eps=1e-5):
    x = jnp.maximum(x.astype(jnp.float32), 0.0)
    mean = jnp.mean(x, axis=(0, 2, 3), keepdims=True)
    var = jnp.mean((x - mean) ** 2, axis=(0, 2, 3), keepdims=True)
    y = (x - mean) / jnp.sqrt(var + eps)
    return y * gamma[None, :, None, None] + beta[None, :, None, None]


if __name__ == "__main__":
    key = jax.random.PRNGKey(0)
    N, C, H, W = 2, 4, 16, 16
    x = jax.random.normal(key, (N, C, H, W), dtype=jnp.float32)

    # BatchNorm2d default parameter init.
    gamma = jnp.ones((C,), dtype=jnp.float32)
    beta = jnp.zeros((C,), dtype=jnp.float32)

    # 1) Small tensor -> VMEM-resident single-pass path.
    out = jax.block_until_ready(relu_bn2d(x, gamma, beta, eps=1e-5))
    ref = _reference(x, gamma, beta, eps=1e-5)
    assert out.shape == (N, C, H, W) and out.dtype == x.dtype
    assert jnp.max(jnp.abs(out - ref)) < 1e-4

    # 2) Forced tiled two-pass path (exercises cdiv tiling, the partial-tile
    #    lane mask and the 2-way stats split).
    N2, C2, H2, W2 = 2, 4, 96, 96
    x2 = jax.random.normal(jax.random.PRNGKey(0), (N2, C2, H2, W2), dtype=jnp.float32)
    out2 = jax.block_until_ready(relu_bn2d(x2, gamma, beta, eps=1e-5, force_tiled=True))
    ref2 = _reference(x2, gamma, beta, eps=1e-5)
    assert jnp.max(jnp.abs(out2 - ref2)) < 1e-4

    # 3) Native bf16 streaming: no wrapper upcast, output keeps input dtype.
    x3 = x2.astype(jnp.bfloat16)
    out3 = jax.block_until_ready(relu_bn2d(x3, gamma, beta, eps=1e-5, force_tiled=True))
    assert out3.dtype == jnp.bfloat16
    ref3 = _reference(x3.astype(jnp.float32), gamma, beta, eps=1e-5)
    assert jnp.max(jnp.abs(out3.astype(jnp.float32) - ref3)) < 5e-2

    print("KERNEL_OK")
</pallas_src>

<mosaic_0001>
module attributes {stable_mosaic.version = 11 : i64} {
  func.func @_resident_kernel(%arg0: memref<2x4x256xf32, #tpu.memory_space<vmem>>, %arg1: memref<4x1xf32, #tpu.memory_space<vmem>>, %arg2: memref<4x1xf32, #tpu.memory_space<vmem>>, %arg3: memref<2x4x256xf32, #tpu.memory_space<vmem>>) attributes {dimension_semantics = [], scalar_prefetch = 0 : i64, scratch_operands = 0 : i64, tpu.core_type = #tpu.core_type<tc>} {
    %c0 = arith.constant 0 : index
    %c0_0 = arith.constant 0 : index
    %c0_1 = arith.constant 0 : index
    %0 = vector.load %arg0[%c0, %c0_0, %c0_1] : memref<2x4x256xf32, #tpu.memory_space<vmem>>, vector<2x4x256xf32>
    %cst = arith.constant 0.000000e+00 : f32
    %1 = vector.broadcast %cst : f32 to vector<2x4x256xf32>
    %2 = arith.maximumf %0, %1 : vector<2x4x256xf32>
    %cst_2 = arith.constant dense<0.000000e+00> : vector<2x4xf32>
    %3 = vector.multi_reduction <add>, %2, %cst_2 [2] : vector<2x4x256xf32> to vector<2x4xf32>
    %4 = vector.shape_cast %3 : vector<2x4xf32> to vector<2x4x1xf32>
    %cst_3 = arith.constant dense<0.000000e+00> : vector<4x1xf32>
    %5 = vector.multi_reduction <add>, %4, %cst_3 [0] : vector<2x4x1xf32> to vector<4x1xf32>
    %6 = arith.mulf %2, %2 : vector<2x4x256xf32>
    %cst_4 = arith.constant dense<0.000000e+00> : vector<2x4xf32>
    %7 = vector.multi_reduction <add>, %6, %cst_4 [2] : vector<2x4x256xf32> to vector<2x4xf32>
    %8 = vector.shape_cast %7 : vector<2x4xf32> to vector<2x4x1xf32>
    %cst_5 = arith.constant dense<0.000000e+00> : vector<4x1xf32>
    %9 = vector.multi_reduction <add>, %8, %cst_5 [0] : vector<2x4x1xf32> to vector<4x1xf32>
    %cst_6 = arith.constant 0.001953125 : f32
    %10 = vector.broadcast %cst_6 : f32 to vector<4x1xf32>
    %11 = arith.mulf %5, %10 : vector<4x1xf32>
    %cst_7 = arith.constant 0.001953125 : f32
    %12 = vector.broadcast %cst_7 : f32 to vector<4x1xf32>
    %13 = arith.mulf %9, %12 : vector<4x1xf32>
    %14 = arith.mulf %11, %11 : vector<4x1xf32>
    %15 = arith.subf %13, %14 : vector<4x1xf32>
    %cst_8 = arith.constant 0.000000e+00 : f32
    %16 = vector.broadcast %cst_8 : f32 to vector<4x1xf32>
    %17 = arith.maximumf %15, %16 : vector<4x1xf32>
    %c0_9 = arith.constant 0 : index
    %c0_10 = arith.constant 0 : index
    %18 = vector.load %arg1[%c0_9, %c0_10] : memref<4x1xf32, #tpu.memory_space<vmem>>, vector<4x1xf32>
    %cst_11 = arith.constant 9.99999974E-6 : f32
    %19 = vector.broadcast %cst_11 : f32 to vector<4x1xf32>
    %20 = arith.addf %17, %19 : vector<4x1xf32>
    %21 = math.rsqrt %20 : vector<4x1xf32>
    %22 = arith.mulf %18, %21 : vector<4x1xf32>
    %c0_12 = arith.constant 0 : index
    %c0_13 = arith.constant 0 : index
    %23 = vector.load %arg2[%c0_12, %c0_13] : memref<4x1xf32, #tpu.memory_space<vmem>>, vector<4x1xf32>
    %24 = arith.mulf %11, %22 : vector<4x1xf32>
    %25 = arith.subf %23, %24 : vector<4x1xf32>
    %26 = vector.shape_cast %22 : vector<4x1xf32> to vector<1x4x1xf32>
    %27 = vector.broadcast %26 : vector<1x4x1xf32> to vector<2x4x256xf32>
    %28 = arith.mulf %2, %27 : vector<2x4x256xf32>
    %29 = vector.shape_cast %25 : vector<4x1xf32> to vector<1x4x1xf32>
    %30 = vector.broadcast %29 : vector<1x4x1xf32> to vector<2x4x256xf32>
    %31 = arith.addf %28, %30 : vector<2x4x256xf32>
    %c0_14 = arith.constant 0 : index
    %c0_15 = arith.constant 0 : index
    %c0_16 = arith.constant 0 : index
    %32 = vector.load %arg3[%c0_14, %c0_15, %c0_16] : memref<2x4x256xf32, #tpu.memory_space<vmem>>, vector<2x4x256xf32>
    tpu.vector_store %arg3[%c0_14, %c0_15, %c0_16], %31 {strides = array<i32>} : memref<2x4x256xf32, #tpu.memory_space<vmem>>, vector<2x4x256xf32>,
    return
  }
}

</mosaic_0001>

<llo_original>
// kernel: tpu_custom_call.1
$region0: #{tpu_custom_call.1}
  #allocation0 [shape = 'u32[]', space=smem, size = 0x4, offset = 0x4, fixed_abs, tag = 'smem constant byte address 0x4 - core index']
  #allocation1 [shape = 'u32[144,128]{1,0:T(1,128)}', space=vmem, size = 0x12000, scoped, tag = 'internal scratch']
  %s0 = inlined_call_operand.hbm [shape: f32[2,4,256], index: 0, kind: input, shape index: {}]
  %s1 = inlined_call_operand.vmem [shape: f32[4,1], index: 1, kind: input, shape index: {}]
  %s2 = inlined_call_operand.vmem [shape: f32[4,1], index: 2, kind: input, shape index: {}]
  %s3 = inlined_call_operand.hbm [shape: f32[2,4,256], index: 3, kind: output, shape index: {}]
  %s4 = sld [smem:[#allocation0]]
  $region26: #{tpu_custom_call.1} parent=0
    _
  %s6 = ssub.s32 1, %s4
  %s7 = scalar_select 0, %s6, %s4
  $region1: #{tpu_custom_call.1} parent=0
    #allocation2 [shape = 'u8[8192]{0}', space=vmem, size = 0x2000, scoped, tag = 'input window, operand 0, single buffered']
    #allocation3 [shape = 's32[1]{0}', space=sflag, size = 0x4, scoped, tag = 'scoped memory for tpu_custom_call.1']
    #allocation4 [shape = 's32[1]{0}', space=sflag, size = 0x4, scoped, tag = 'scoped memory for tpu_custom_call.1']
    #allocation5 [shape = 'u8[8192]{0}', space=vmem, size = 0x2000, scoped, tag = 'output window, operand 0, single buffered']
    %8 = vsyncpa [#allocation3], 0
    %9 = vsyncpa [#allocation4], 0
    // Predicated region
    $region2: #{tpu_custom_call.1} parent=1 // pred_check
      _
    $region3: #{tpu_custom_call.1} parent=1 // pred_check_branch
      %11 = sbr.rel (0) target = $region5
    $region4: #{tpu_custom_call.1} parent=1 // pred_region
      %s13 = ssub.s32 256, 256
      %14 = vsyncadd [#allocation3], %s13
      %s15 = sshll.u32 [#allocation2], 4
      %s16 = int_to_ptr.vmem [resolvable:$true] %s15
      %21 = dma.hbm_to_vmem [thread:$0]  %s0, 256, %s16, [#allocation3], 128, 128, 8
    $region5: #{tpu_custom_call.1} parent=1 // pred_fallthru
      _
    // Predicated region
    $region6: #{tpu_custom_call.1} parent=1 // pred_check
      _
    $region7: #{tpu_custom_call.1} parent=1 // pred_check_branch
      %23 = sbr.rel (0) target = $region9
    $region8: #{tpu_custom_call.1} parent=1 // pred_region
      _
    $region9: #{tpu_custom_call.1} parent=1 // pred_fallthru
      _
    // Predicated region
    $region10: #{tpu_custom_call.1} parent=1 // pred_check
      _
    $region11: #{tpu_custom_call.1} parent=1 // pred_check_branch
      %25 = sbr.rel (0) target = $region13
    $region12: #{tpu_custom_call.1} parent=1 // pred_region
      _
    $region13: #{tpu_custom_call.1} parent=1 // pred_fallthru
      _
    // Predicated region
    $region14: #{tpu_custom_call.1} parent=1 // pred_check
      _
    $region15: #{tpu_custom_call.1} parent=1 // pred_check_branch
      %27 = sbr.rel (0) target = $region17
    $region16: #{tpu_custom_call.1} parent=1 // pred_region
      %28 = dma.done [#allocation3], 256
    $region17: #{tpu_custom_call.1} parent=1 // pred_fallthru
      _
    %v29 = vld [vmem:[#allocation2] sm:$0xff]
    %v30 = vld [vmem:[#allocation2 + $0x8] sm:$0xff]
    %v31 = vmax.f32 %v29, 0.0
    %v32 = vmax.f32 %v30, 0.0
    %v35 = vcombine.high %v31, %v31
    %v36 = vcombine.high %v32, %v32
    %vm39 = vcmask 1043456
    %v40 = vsel %vm39, %v31, 0.0
    %v41 = vsel %vm39, %v35, 0.0
    %v42 = vadd.f32 %v40, %v41
    %43 = vadd.xlane.f32.xlu0 %v42
    %v44 = vpop.xlane.xlu0 %43
    %v45 = vsel %vm39, %v32, 0.0
    %v46 = vsel %vm39, %v36, 0.0
    %v47 = vadd.f32 %v45, %v46
    %48 = vadd.xlane.f32.xlu0 %v47
    %v49 = vpop.xlane.xlu0 %48
    %v50 = vsel %vm39, %v44, 0.0
    %v51 = vsel %vm39, %v49, 0.0
    %v52 = vadd.f32 %v50, %v51
    %v53 = vmul.f32 %v31, %v31
    %v54 = vmul.f32 %v32, %v32
    %v57 = vcombine.high %v53, %v53
    %v58 = vcombine.high %v54, %v54
    %v61 = vsel %vm39, %v53, 0.0
    %v62 = vsel %vm39, %v57, 0.0
    %v63 = vadd.f32 %v61, %v62
    %64 = vadd.xlane.f32.xlu0 %v63
    %v65 = vpop.xlane.xlu0 %64
    %v66 = vsel %vm39, %v54, 0.0
    %v67 = vsel %vm39, %v58, 0.0
    %v68 = vadd.f32 %v66, %v67
    %69 = vadd.xlane.f32.xlu0 %v68
    %v70 = vpop.xlane.xlu0 %69
    %v71 = vsel %vm39, %v65, 0.0
    %v72 = vsel %vm39, %v70, 0.0
    %v73 = vadd.f32 %v71, %v72
    %v74 = vmul.f32 %v52, 0.001953125
    %v75 = vmul.f32 %v73, 0.001953125
    %v76 = vmul.f32 %v74, %v74
    %v77 = vsub.f32 %v75, %v76
    %v78 = vmax.f32 %v77, 0.0
    %v79 = vld [vmem:[%s1] sm:$0xf]
    %v80 = vadd.f32 %v78, 1e-05
    %v81 = vrsqrt.pop %v80
    %v82 = vmul.f32 %v79, %v81
    %v83 = vld [vmem:[%s2] sm:$0xf]
    %v84 = vmul.f32 %v74, %v82
    %v85 = vsub.f32 %v83, %v84
    %87 = vset.pattern.permute.xlu0 0
    %88 = vperm.xlu0 %87, %v82
    %v89 = vpop.permute.xlu0 %88
    %v91 = vunpack.c.l.s4 839922192
    %v92 = vunpack.c.0.s8 %v91
    %v93 = vlaneseq
    %v94 = vshrl.u32 %v93, 7
    %v95 = vsub.s32 %v92, %v94
    %v96 = vrot.slane %v89, %v95
    %v98 = vmul.f32 %v31, %v96
    %v99 = vmul.f32 %v32, %v96
    %101 = vset.pattern.permute.xlu0 0
    %102 = vperm.xlu0 %101, %v85
    %v103 = vpop.permute.xlu0 %102
    %v105 = vunpack.c.l.s4 839922192
    %v106 = vunpack.c.0.s8 %v105
    %v107 = vlaneseq
    %v108 = vshrl.u32 %v107, 7
    %v109 = vsub.s32 %v106, %v108
    %v110 = vrot.slane %v103, %v109
    %v112 = vadd.f32 %v98, %v110
    %v113 = vadd.f32 %v99, %v110
    %114 = vst [vmem:[#allocation5] sm:$0xff] %v112
    %115 = vst [vmem:[#allocation5 + $0x8] sm:$0xff] %v113
    // Predicated region
    $region18: #{tpu_custom_call.1} parent=1 // pred_check
      _
    $region19: #{tpu_custom_call.1} parent=1 // pred_check_branch
      %117 = sbr.rel (0) target = $region21
    $region20: #{tpu_custom_call.1} parent=1 // pred_region
      %s119 = ssub.s32 256, 256
      %120 = vsyncadd [#allocation4], %s119
      %s121 = sshll.u32 [#allocation5], 4
      %s122 = int_to_ptr.vmem [resolvable:$true] %s121
      %127 = dma.vmem_to_hbm [thread:$0]  %s122, 256, %s3, [#allocation4], 128, 128, 8
    $region21: #{tpu_custom_call.1} parent=1 // pred_fallthru
      _
    // Predicated region
    $region22: #{tpu_custom_call.1} parent=1 // pred_check
      _
    $region23: #{tpu_custom_call.1} parent=1 // pred_check_branch
      %129 = sbr.rel (0) target = $region25
    $region24: #{tpu_custom_call.1} parent=1 // pred_region
      %130 = dma.done [#allocation4], 256
    $region25: #{tpu_custom_call.1} parent=1 // pred_fallthru
      _
    %131 = vsyncpa [#allocation3], 1
    %132 = vsyncpa [#allocation4], 1

</llo_original>
